<compile_context>
chip_gen: v7x
topology: tpu7x:2x2x1
jax: 0.10.0
libtpu: 0.0.40
codegen_flags: <defaults>
</compile_context>

<pallas_src>
import jax
import jax.numpy as jnp
from jax.experimental import pallas as pl
from jax.experimental.pallas import tpu as pltpu


# Batch tile on the lane axis. Multiple of 128; 512-2048 already reaches
# 85%+ of HBM roofline per measured data, and ~2 MiB/tile fits every chip.
_TB_MAX = 2048


def _lunge_mlp_kernel(x_ref, w1_ref, b1_ref, w2_ref, b2_ref, w3_ref, b3_ref,
                      o_ref):
    """One batch tile of the fused 3-layer MLP (features-major layout).

    x_ref : [4,  TB]    w1_ref: [64, 4]    b1_ref: [64, 1]
    w2_ref: [32, 64]    b2_ref: [32, 1]
    w3_ref: [2,  32]    b3_ref: [2,  1]
    o_ref : [2,  TB]
    """
    x = x_ref[...]                                    # [4, TB]
    w1 = w1_ref[...]                                  # [64, 4]

    # Layer 1: K=4 contraction as 4 broadcast-FMAs on the VPU
    # (unrolled at trace time; VALU slots are otherwise idle here).
    h1 = w1[:, 0:1] * x[0:1, :]                       # [64, TB]
    for k in range(1, 4):
        h1 = h1 + w1[:, k:k + 1] * x[k:k + 1, :]
    h1 = jnp.maximum(h1 + b1_ref[...], 0.0)           # bias: [64,1] column

    # Layer 2: 64x32 contraction on the MXU, f32 accumulation.
    h2 = jnp.dot(w2_ref[...], h1, preferred_element_type=jnp.float32)
    h2 = jnp.maximum(h2 + b2_ref[...], 0.0)           # [32, TB]

    # Layer 3: logits on the MXU.
    h3 = jnp.dot(w3_ref[...], h2, preferred_element_type=jnp.float32)
    o_ref[...] = (h3 + b3_ref[...]).astype(o_ref.dtype)   # [2, TB]


def _round_up(n, m):
    return ((n + m - 1) // m) * m


def lunge_classifier_forward(x, params):
    """Forward pass of LungeClassifier as a single fused Pallas kernel.

    x: [B, 4] float32 (same layout as the PyTorch module's input)
    params: PyTorch-layout params:
        w1 [64, 4], b1 [64], w2 [32, 64], b2 [32], w3 [2, 32], b3 [2]
    returns: [B, 2] float32 logits
    """
    B = x.shape[0]
    w1, b1 = params["w1"], params["b1"]
    w2, b2 = params["w2"], params["b2"]
    w3, b3 = params["w3"], params["b3"]

    # Batch rides the lane axis: pad B up to a multiple of the batch tile.
    Bp = _round_up(max(B, 128), 128)
    TB = min(_TB_MAX, Bp)
    Bp = _round_up(Bp, TB)

    xT = jnp.asarray(x, jnp.float32).T                # [4, B]
    if Bp != B:
        xT = jnp.pad(xT, ((0, 0), (0, Bp - B)))       # [4, Bp]

    # Biases as [out, 1] columns: per-sublane add broadcast across B lanes.
    b1c = b1.reshape(-1, 1).astype(jnp.float32)
    b2c = b2.reshape(-1, 1).astype(jnp.float32)
    b3c = b3.reshape(-1, 1).astype(jnp.float32)

    # Weights/biases: constant index_map -> fetched once, stay VMEM-resident.
    resident = lambda arr: pl.BlockSpec(arr.shape, lambda i: (0, 0))

    out_t = pl.pallas_call(
        _lunge_mlp_kernel,
        out_shape=jax.ShapeDtypeStruct((2, Bp), jnp.float32),
        grid=(Bp // TB,),
        in_specs=[
            pl.BlockSpec((4, TB), lambda i: (0, i)),  # x tile (double-buffered)
            resident(w1), resident(b1c),
            resident(w2), resident(b2c),
            resident(w3), resident(b3c),
        ],
        out_specs=pl.BlockSpec((2, TB), lambda i: (0, i)),
        compiler_params=pltpu.CompilerParams(
            dimension_semantics=("parallel",)),       # 2 TCs on v7x
    )(xT, w1, b1c, w2, b2c, w3, b3c)

    return out_t[:, :B].T                             # back to [B, 2]


def init_params(key):
    """PyTorch nn.Linear-style params: weight [out, in], bias [out],
    uniform(-1/sqrt(fan_in), 1/sqrt(fan_in))."""
    dims = [(4, 64), (64, 32), (32, 2)]
    params = {}
    keys = jax.random.split(key, 2 * len(dims))
    for i, (fan_in, fan_out) in enumerate(dims):
        bound = 1.0 / jnp.sqrt(float(fan_in))
        w = jax.random.uniform(keys[2 * i], (fan_out, fan_in),
                               minval=-bound, maxval=bound, dtype=jnp.float32)
        b = jax.random.uniform(keys[2 * i + 1], (fan_out,),
                               minval=-bound, maxval=bound, dtype=jnp.float32)
        params[f"w{i + 1}"] = w
        params[f"b{i + 1}"] = b
    return params


def reference_forward(x, params):
    h = jnp.maximum(x @ params["w1"].T + params["b1"], 0.0)
    h = jnp.maximum(h @ params["w2"].T + params["b2"], 0.0)
    return h @ params["w3"].T + params["b3"]


if __name__ == "__main__":
    key = jax.random.PRNGKey(0)
    k_x, k_p = jax.random.split(key)

    B = 8  # small demo batch (kernel pads to one 128-lane tile internally)
    x = jax.random.normal(k_x, (B, 4), dtype=jnp.float32)
    params = init_params(k_p)

    out = lunge_classifier_forward(x, params)
    out = jax.block_until_ready(out)

    ref = reference_forward(x, params)
    assert out.shape == (B, 2)
    assert jnp.allclose(out, ref, atol=1e-4, rtol=1e-4), "mismatch vs reference"

    print("KERNEL_OK")
</pallas_src>

<mosaic_0001>
module attributes {stable_mosaic.version = 11 : i64} {
  func.func @_lunge_mlp_kernel(%arg0: i32, %arg1: memref<4x128xf32, #tpu.memory_space<vmem>>, %arg2: memref<64x4xf32, #tpu.memory_space<vmem>>, %arg3: memref<64x1xf32, #tpu.memory_space<vmem>>, %arg4: memref<32x64xf32, #tpu.memory_space<vmem>>, %arg5: memref<32x1xf32, #tpu.memory_space<vmem>>, %arg6: memref<2x32xf32, #tpu.memory_space<vmem>>, %arg7: memref<2x1xf32, #tpu.memory_space<vmem>>, %arg8: memref<2x128xf32, #tpu.memory_space<vmem>>) attributes {dimension_semantics = [#tpu.dimension_semantics<parallel>], iteration_bounds = array<i64: 1>, scalar_prefetch = 0 : i64, scratch_operands = 0 : i64, tpu.core_type = #tpu.core_type<tc>, window_params = [{transform_indices = @transform_0, window_bounds = array<i64: 4, 128>}, {pipeline_mode = #tpu.pipeline_mode<synchronous>, transform_indices = @transform_1, window_bounds = array<i64: 64, 4>}, {pipeline_mode = #tpu.pipeline_mode<synchronous>, transform_indices = @transform_2, window_bounds = array<i64: 64, 1>}, {pipeline_mode = #tpu.pipeline_mode<synchronous>, transform_indices = @transform_3, window_bounds = array<i64: 32, 64>}, {pipeline_mode = #tpu.pipeline_mode<synchronous>, transform_indices = @transform_4, window_bounds = array<i64: 32, 1>}, {pipeline_mode = #tpu.pipeline_mode<synchronous>, transform_indices = @transform_5, window_bounds = array<i64: 2, 32>}, {pipeline_mode = #tpu.pipeline_mode<synchronous>, transform_indices = @transform_6, window_bounds = array<i64: 2, 1>}, {transform_indices = @transform_7, window_bounds = array<i64: 2, 128>}]} {
    %c0 = arith.constant 0 : index
    %c0_0 = arith.constant 0 : index
    %0 = vector.load %arg1[%c0, %c0_0] : memref<4x128xf32, #tpu.memory_space<vmem>>, vector<4x128xf32>
    %c0_1 = arith.constant 0 : index
    %c0_2 = arith.constant 0 : index
    %1 = vector.load %arg2[%c0_1, %c0_2] : memref<64x4xf32, #tpu.memory_space<vmem>>, vector<64x4xf32>
    %2 = vector.extract_strided_slice %1 {offsets = [0, 0], sizes = [64, 1], strides = [1, 1]} : vector<64x4xf32> to vector<64x1xf32>
    %3 = vector.extract_strided_slice %0 {offsets = [0, 0], sizes = [1, 128], strides = [1, 1]} : vector<4x128xf32> to vector<1x128xf32>
    %4 = vector.broadcast %2 : vector<64x1xf32> to vector<64x128xf32>
    %5 = vector.broadcast %3 : vector<1x128xf32> to vector<64x128xf32>
    %6 = arith.mulf %4, %5 : vector<64x128xf32>
    %7 = vector.extract_strided_slice %1 {offsets = [0, 1], sizes = [64, 1], strides = [1, 1]} : vector<64x4xf32> to vector<64x1xf32>
    %8 = vector.extract_strided_slice %0 {offsets = [1, 0], sizes = [1, 128], strides = [1, 1]} : vector<4x128xf32> to vector<1x128xf32>
    %9 = vector.broadcast %7 : vector<64x1xf32> to vector<64x128xf32>
    %10 = vector.broadcast %8 : vector<1x128xf32> to vector<64x128xf32>
    %11 = arith.mulf %9, %10 : vector<64x128xf32>
    %12 = arith.addf %6, %11 : vector<64x128xf32>
    %13 = vector.extract_strided_slice %1 {offsets = [0, 2], sizes = [64, 1], strides = [1, 1]} : vector<64x4xf32> to vector<64x1xf32>
    %14 = vector.extract_strided_slice %0 {offsets = [2, 0], sizes = [1, 128], strides = [1, 1]} : vector<4x128xf32> to vector<1x128xf32>
    %15 = vector.broadcast %13 : vector<64x1xf32> to vector<64x128xf32>
    %16 = vector.broadcast %14 : vector<1x128xf32> to vector<64x128xf32>
    %17 = arith.mulf %15, %16 : vector<64x128xf32>
    %18 = arith.addf %12, %17 : vector<64x128xf32>
    %19 = vector.extract_strided_slice %1 {offsets = [0, 3], sizes = [64, 1], strides = [1, 1]} : vector<64x4xf32> to vector<64x1xf32>
    %20 = vector.extract_strided_slice %0 {offsets = [3, 0], sizes = [1, 128], strides = [1, 1]} : vector<4x128xf32> to vector<1x128xf32>
    %21 = vector.broadcast %19 : vector<64x1xf32> to vector<64x128xf32>
    %22 = vector.broadcast %20 : vector<1x128xf32> to vector<64x128xf32>
    %23 = arith.mulf %21, %22 : vector<64x128xf32>
    %24 = arith.addf %18, %23 : vector<64x128xf32>
    %c0_3 = arith.constant 0 : index
    %c0_4 = arith.constant 0 : index
    %25 = vector.load %arg3[%c0_3, %c0_4] : memref<64x1xf32, #tpu.memory_space<vmem>>, vector<64x1xf32>
    %26 = vector.broadcast %25 : vector<64x1xf32> to vector<64x128xf32>
    %27 = arith.addf %24, %26 : vector<64x128xf32>
    %cst = arith.constant 0.000000e+00 : f32
    %28 = vector.broadcast %cst : f32 to vector<64x128xf32>
    %29 = arith.maximumf %27, %28 : vector<64x128xf32>
    %c0_5 = arith.constant 0 : index
    %c0_6 = arith.constant 0 : index
    %30 = vector.load %arg4[%c0_5, %c0_6] : memref<32x64xf32, #tpu.memory_space<vmem>>, vector<32x64xf32>
    %cst_7 = arith.constant dense<0.000000e+00> : vector<32x128xf32>
    %31 = tpu.matmul %30, %29, %cst_7 {dimension_numbers = #tpu.dot_dimension_numbers<[1], [0], [0], [1], [0, 0, 1, 1], [], []>} : vector<32x64xf32>, vector<64x128xf32>, vector<32x128xf32> -> vector<32x128xf32>
    %c0_8 = arith.constant 0 : index
    %c0_9 = arith.constant 0 : index
    %32 = vector.load %arg5[%c0_8, %c0_9] : memref<32x1xf32, #tpu.memory_space<vmem>>, vector<32x1xf32>
    %33 = vector.broadcast %32 : vector<32x1xf32> to vector<32x128xf32>
    %34 = arith.addf %31, %33 : vector<32x128xf32>
    %cst_10 = arith.constant 0.000000e+00 : f32
    %35 = vector.broadcast %cst_10 : f32 to vector<32x128xf32>
    %36 = arith.maximumf %34, %35 : vector<32x128xf32>
    %c0_11 = arith.constant 0 : index
    %c0_12 = arith.constant 0 : index
    %37 = vector.load %arg6[%c0_11, %c0_12] : memref<2x32xf32, #tpu.memory_space<vmem>>, vector<2x32xf32>
    %cst_13 = arith.constant dense<0.000000e+00> : vector<2x128xf32>
    %38 = tpu.matmul %37, %36, %cst_13 {dimension_numbers = #tpu.dot_dimension_numbers<[1], [0], [0], [1], [0, 0, 1, 1], [], []>} : vector<2x32xf32>, vector<32x128xf32>, vector<2x128xf32> -> vector<2x128xf32>
    %c0_14 = arith.constant 0 : index
    %c0_15 = arith.constant 0 : index
    %39 = vector.load %arg7[%c0_14, %c0_15] : memref<2x1xf32, #tpu.memory_space<vmem>>, vector<2x1xf32>
    %40 = vector.broadcast %39 : vector<2x1xf32> to vector<2x128xf32>
    %41 = arith.addf %38, %40 : vector<2x128xf32>
    %c0_16 = arith.constant 0 : index
    %c0_17 = arith.constant 0 : index
    %42 = vector.load %arg8[%c0_16, %c0_17] : memref<2x128xf32, #tpu.memory_space<vmem>>, vector<2x128xf32>
    tpu.vector_store %arg8[%c0_16, %c0_17], %41 {strides = array<i32>} : memref<2x128xf32, #tpu.memory_space<vmem>>, vector<2x128xf32>,
    return
  }
  func.func @transform_0(%arg0: i32) -> (i32, i32) {
    %c0_i32 = arith.constant 0 : i32
    %c0_i32_0 = arith.constant 0 : i32
    return %c0_i32, %arg0 : i32, i32
  }
  func.func @transform_1(%arg0: i32) -> (i32, i32) {
    %c0_i32 = arith.constant 0 : i32
    %c0_i32_0 = arith.constant 0 : i32
    %c0_i32_1 = arith.constant 0 : i32
    return %c0_i32, %c0_i32_0 : i32, i32
  }
  func.func @transform_2(%arg0: i32) -> (i32, i32) {
    %c0_i32 = arith.constant 0 : i32
    %c0_i32_0 = arith.constant 0 : i32
    %c0_i32_1 = arith.constant 0 : i32
    return %c0_i32, %c0_i32_0 : i32, i32
  }
  func.func @transform_3(%arg0: i32) -> (i32, i32) {
    %c0_i32 = arith.constant 0 : i32
    %c0_i32_0 = arith.constant 0 : i32
    %c0_i32_1 = arith.constant 0 : i32
    return %c0_i32, %c0_i32_0 : i32, i32
  }
  func.func @transform_4(%arg0: i32) -> (i32, i32) {
    %c0_i32 = arith.constant 0 : i32
    %c0_i32_0 = arith.constant 0 : i32
    %c0_i32_1 = arith.constant 0 : i32
    return %c0_i32, %c0_i32_0 : i32, i32
  }
  func.func @transform_5(%arg0: i32) -> (i32, i32) {
    %c0_i32 = arith.constant 0 : i32
    %c0_i32_0 = arith.constant 0 : i32
    %c0_i32_1 = arith.constant 0 : i32
    return %c0_i32, %c0_i32_0 : i32, i32
  }
  func.func @transform_6(%arg0: i32) -> (i32, i32) {
    %c0_i32 = arith.constant 0 : i32
    %c0_i32_0 = arith.constant 0 : i32
    %c0_i32_1 = arith.constant 0 : i32
    return %c0_i32, %c0_i32_0 : i32, i32
  }
  func.func @transform_7(%arg0: i32) -> (i32, i32) {
    %c0_i32 = arith.constant 0 : i32
    %c0_i32_0 = arith.constant 0 : i32
    return %c0_i32, %arg0 : i32, i32
  }
}

</mosaic_0001>

<llo_original>
// kernel: tpu_custom_call.1
$region0: #{tpu_custom_call.1}
  #allocation0 [shape = 'u32[]', space=smem, size = 0x4, offset = 0x4, fixed_abs, tag = 'smem constant byte address 0x4 - core index']
  #allocation1 [shape = 'u32[144,128]{1,0:T(1,128)}', space=vmem, size = 0x12000, scoped, tag = 'internal scratch']
  %s0 = inlined_call_operand.vmem [shape: f32[4,128], index: 0, kind: input, shape index: {}]
  %s1 = inlined_call_operand.vmem [shape: f32[64,4], index: 1, kind: input, shape index: {}]
  %s2 = inlined_call_operand.vmem [shape: f32[64,1], index: 2, kind: input, shape index: {}]
  %s3 = inlined_call_operand.vmem [shape: f32[32,64], index: 3, kind: input, shape index: {}]
  %s4 = inlined_call_operand.vmem [shape: f32[32,1], index: 4, kind: input, shape index: {}]
  %s5 = inlined_call_operand.vmem [shape: f32[2,32], index: 5, kind: input, shape index: {}]
  %s6 = inlined_call_operand.vmem [shape: f32[2,1], index: 6, kind: input, shape index: {}]
  %s7 = inlined_call_operand.hbm [shape: f32[2,128], index: 7, kind: output, shape index: {}]
  %s8 = sld [smem:[#allocation0]]
  $region38: #{tpu_custom_call.1} parent=0
    _
  %s10 = ssub.s32 1, %s8
  %s11 = scalar_select 0, %s10, %s8
  $region1: #{tpu_custom_call.1} parent=0
    #allocation2 [shape = 'u8[1024]{0}', space=vmem, size = 0x400, scoped, tag = 'output window, operand 0, single buffered']
    #allocation3 [shape = 's32[1]{0}', space=sflag, size = 0x4, scoped, tag = 'scoped memory for tpu_custom_call.1']
    %12 = vsyncpa [#allocation3], 0
    // Predicated region
    $region2: #{tpu_custom_call.1} parent=1 // pred_check
      _
    $region3: #{tpu_custom_call.1} parent=1 // pred_check_branch
      %14 = sbr.rel (0) target = $region5
    $region4: #{tpu_custom_call.1} parent=1 // pred_region
      _
    $region5: #{tpu_custom_call.1} parent=1 // pred_fallthru
      _
    // Predicated region
    $region6: #{tpu_custom_call.1} parent=1 // pred_check
      _
    $region7: #{tpu_custom_call.1} parent=1 // pred_check_branch
      %16 = sbr.rel (0) target = $region9
    $region8: #{tpu_custom_call.1} parent=1 // pred_region
      _
    $region9: #{tpu_custom_call.1} parent=1 // pred_fallthru
      _
    // Predicated region
    $region10: #{tpu_custom_call.1} parent=1 // pred_check
      _
    $region11: #{tpu_custom_call.1} parent=1 // pred_check_branch
      %18 = sbr.rel (0) target = $region13
    $region12: #{tpu_custom_call.1} parent=1 // pred_region
      _
    $region13: #{tpu_custom_call.1} parent=1 // pred_fallthru
      _
    // Predicated region
    $region14: #{tpu_custom_call.1} parent=1 // pred_check
      _
    $region15: #{tpu_custom_call.1} parent=1 // pred_check_branch
      %20 = sbr.rel (0) target = $region17
    $region16: #{tpu_custom_call.1} parent=1 // pred_region
      _
    $region17: #{tpu_custom_call.1} parent=1 // pred_fallthru
      _
    // Predicated region
    $region18: #{tpu_custom_call.1} parent=1 // pred_check
      _
    $region19: #{tpu_custom_call.1} parent=1 // pred_check_branch
      %22 = sbr.rel (0) target = $region21
    $region20: #{tpu_custom_call.1} parent=1 // pred_region
      _
    $region21: #{tpu_custom_call.1} parent=1 // pred_fallthru
      _
    // Predicated region
    $region22: #{tpu_custom_call.1} parent=1 // pred_check
      _
    $region23: #{tpu_custom_call.1} parent=1 // pred_check_branch
      %24 = sbr.rel (0) target = $region25
    $region24: #{tpu_custom_call.1} parent=1 // pred_region
      _
    $region25: #{tpu_custom_call.1} parent=1 // pred_fallthru
      _
    // Predicated region
    $region26: #{tpu_custom_call.1} parent=1 // pred_check
      _
    $region27: #{tpu_custom_call.1} parent=1 // pred_check_branch
      %26 = sbr.rel (0) target = $region29
    $region28: #{tpu_custom_call.1} parent=1 // pred_region
      _
    $region29: #{tpu_custom_call.1} parent=1 // pred_fallthru
      _
    %v27 = vld [vmem:[%s0] sm:$0xf]
    %v28 = vld [vmem:[%s1] sm:$0xff]
    %v29 = vld [vmem:[%s1 + $0x8] sm:$0xff]
    %v30 = vld [vmem:[%s1 + $0x10] sm:$0xff]
    %v31 = vld [vmem:[%s1 + $0x18] sm:$0xff]
    %v32 = vld [vmem:[%s1 + $0x20] sm:$0xff]
    %v33 = vld [vmem:[%s1 + $0x28] sm:$0xff]
    %v34 = vld [vmem:[%s1 + $0x30] sm:$0xff]
    %v35 = vld [vmem:[%s1 + $0x38] sm:$0xff]
    %37 = vset.pattern.permute.xlu0 0
    %38 = vperm.xlu0 %37, %v28
    %v39 = vpop.permute.xlu0 %38
    %42 = vset.pattern.permute.xlu0 0
    %43 = vperm.xlu0 %42, %v29
    %v44 = vpop.permute.xlu0 %43
    %47 = vset.pattern.permute.xlu0 0
    %48 = vperm.xlu0 %47, %v30
    %v49 = vpop.permute.xlu0 %48
    %52 = vset.pattern.permute.xlu0 0
    %53 = vperm.xlu0 %52, %v31
    %v54 = vpop.permute.xlu0 %53
    %57 = vset.pattern.permute.xlu0 0
    %58 = vperm.xlu0 %57, %v32
    %v59 = vpop.permute.xlu0 %58
    %62 = vset.pattern.permute.xlu0 0
    %63 = vperm.xlu0 %62, %v33
    %v64 = vpop.permute.xlu0 %63
    %67 = vset.pattern.permute.xlu0 0
    %68 = vperm.xlu0 %67, %v34
    %v69 = vpop.permute.xlu0 %68
    %72 = vset.pattern.permute.xlu0 0
    %73 = vperm.xlu0 %72, %v35
    %v74 = vpop.permute.xlu0 %73
    %v76 = vlaneseq
    %v77 = vshrl.u32 %v76, 7
    %v78 = vsub.s32 0, %v77
    %v79 = vrot.slane %v27, %v78
    %v80 = vmul.f32 %v39, %v79
    %v81 = vmul.f32 %v44, %v79
    %v82 = vmul.f32 %v49, %v79
    %v83 = vmul.f32 %v54, %v79
    %v84 = vmul.f32 %v59, %v79
    %v85 = vmul.f32 %v64, %v79
    %v86 = vmul.f32 %v69, %v79
    %v87 = vmul.f32 %v74, %v79
    %88 = vset.pattern.permute.xlu0 1
    %89 = vperm.xlu0 %88, %v28
    %v90 = vpop.permute.xlu0 %89
    %92 = vset.pattern.permute.xlu0 1
    %93 = vperm.xlu0 %92, %v29
    %v94 = vpop.permute.xlu0 %93
    %96 = vset.pattern.permute.xlu0 1
    %97 = vperm.xlu0 %96, %v30
    %v98 = vpop.permute.xlu0 %97
    %100 = vset.pattern.permute.xlu0 1
    %101 = vperm.xlu0 %100, %v31
    %v102 = vpop.permute.xlu0 %101
    %104 = vset.pattern.permute.xlu0 1
    %105 = vperm.xlu0 %104, %v32
    %v106 = vpop.permute.xlu0 %105
    %108 = vset.pattern.permute.xlu0 1
    %109 = vperm.xlu0 %108, %v33
    %v110 = vpop.permute.xlu0 %109
    %112 = vset.pattern.permute.xlu0 1
    %113 = vperm.xlu0 %112, %v34
    %v114 = vpop.permute.xlu0 %113
    %116 = vset.pattern.permute.xlu0 1
    %117 = vperm.xlu0 %116, %v35
    %v118 = vpop.permute.xlu0 %117
    %v120 = vlaneseq
    %v121 = vshrl.u32 %v120, 7
    %v122 = vsub.s32 1, %v121
    %v123 = vrot.slane %v27, %v122
    %v124 = vmul.f32 %v90, %v123
    %v125 = vmul.f32 %v94, %v123
    %v126 = vmul.f32 %v98, %v123
    %v127 = vmul.f32 %v102, %v123
    %v128 = vmul.f32 %v106, %v123
    %v129 = vmul.f32 %v110, %v123
    %v130 = vmul.f32 %v114, %v123
    %v131 = vmul.f32 %v118, %v123
    %v132 = vadd.f32 %v80, %v124
    %v133 = vadd.f32 %v81, %v125
    %v134 = vadd.f32 %v82, %v126
    %v135 = vadd.f32 %v83, %v127
    %v136 = vadd.f32 %v84, %v128
    %v137 = vadd.f32 %v85, %v129
    %v138 = vadd.f32 %v86, %v130
    %v139 = vadd.f32 %v87, %v131
    %140 = vset.pattern.permute.xlu0 2
    %141 = vperm.xlu0 %140, %v28
    %v142 = vpop.permute.xlu0 %141
    %144 = vset.pattern.permute.xlu0 2
    %145 = vperm.xlu0 %144, %v29
    %v146 = vpop.permute.xlu0 %145
    %148 = vset.pattern.permute.xlu0 2
    %149 = vperm.xlu0 %148, %v30
    %v150 = vpop.permute.xlu0 %149
    %152 = vset.pattern.permute.xlu0 2
    %153 = vperm.xlu0 %152, %v31
    %v154 = vpop.permute.xlu0 %153
    %156 = vset.pattern.permute.xlu0 2
    %157 = vperm.xlu0 %156, %v32
    %v158 = vpop.permute.xlu0 %157
    %160 = vset.pattern.permute.xlu0 2
    %161 = vperm.xlu0 %160, %v33
    %v162 = vpop.permute.xlu0 %161
    %164 = vset.pattern.permute.xlu0 2
    %165 = vperm.xlu0 %164, %v34
    %v166 = vpop.permute.xlu0 %165
    %168 = vset.pattern.permute.xlu0 2
    %169 = vperm.xlu0 %168, %v35
    %v170 = vpop.permute.xlu0 %169
    %v172 = vlaneseq
    %v173 = vshrl.u32 %v172, 7
    %v174 = vsub.s32 2, %v173
    %v175 = vrot.slane %v27, %v174
    %v176 = vmul.f32 %v142, %v175
    %v177 = vmul.f32 %v146, %v175
    %v178 = vmul.f32 %v150, %v175
    %v179 = vmul.f32 %v154, %v175
    %v180 = vmul.f32 %v158, %v175
    %v181 = vmul.f32 %v162, %v175
    %v182 = vmul.f32 %v166, %v175
    %v183 = vmul.f32 %v170, %v175
    %v184 = vadd.f32 %v132, %v176
    %v185 = vadd.f32 %v133, %v177
    %v186 = vadd.f32 %v134, %v178
    %v187 = vadd.f32 %v135, %v179
    %v188 = vadd.f32 %v136, %v180
    %v189 = vadd.f32 %v137, %v181
    %v190 = vadd.f32 %v138, %v182
    %v191 = vadd.f32 %v139, %v183
    %192 = vset.pattern.permute.xlu0 3
    %193 = vperm.xlu0 %192, %v28
    %v194 = vpop.permute.xlu0 %193
    %196 = vset.pattern.permute.xlu0 3
    %197 = vperm.xlu0 %196, %v29
    %v198 = vpop.permute.xlu0 %197
    %200 = vset.pattern.permute.xlu0 3
    %201 = vperm.xlu0 %200, %v30
    %v202 = vpop.permute.xlu0 %201
    %204 = vset.pattern.permute.xlu0 3
    %205 = vperm.xlu0 %204, %v31
    %v206 = vpop.permute.xlu0 %205
    %208 = vset.pattern.permute.xlu0 3
    %209 = vperm.xlu0 %208, %v32
    %v210 = vpop.permute.xlu0 %209
    %212 = vset.pattern.permute.xlu0 3
    %213 = vperm.xlu0 %212, %v33
    %v214 = vpop.permute.xlu0 %213
    %216 = vset.pattern.permute.xlu0 3
    %217 = vperm.xlu0 %216, %v34
    %v218 = vpop.permute.xlu0 %217
    %220 = vset.pattern.permute.xlu0 3
    %221 = vperm.xlu0 %220, %v35
    %v222 = vpop.permute.xlu0 %221
    %v224 = vlaneseq
    %v225 = vshrl.u32 %v224, 7
    %v226 = vsub.s32 3, %v225
    %v227 = vrot.slane %v27, %v226
    %v228 = vmul.f32 %v194, %v227
    %v229 = vmul.f32 %v198, %v227
    %v230 = vmul.f32 %v202, %v227
    %v231 = vmul.f32 %v206, %v227
    %v232 = vmul.f32 %v210, %v227
    %v233 = vmul.f32 %v214, %v227
    %v234 = vmul.f32 %v218, %v227
    %v235 = vmul.f32 %v222, %v227
    %v236 = vadd.f32 %v184, %v228
    %v237 = vadd.f32 %v185, %v229
    %v238 = vadd.f32 %v186, %v230
    %v239 = vadd.f32 %v187, %v231
    %v240 = vadd.f32 %v188, %v232
    %v241 = vadd.f32 %v189, %v233
    %v242 = vadd.f32 %v190, %v234
    %v243 = vadd.f32 %v191, %v235
    %v244 = vld [vmem:[%s2] sm:$0xff]
    %v245 = vld [vmem:[%s2 + $0x8] sm:$0xff]
    %v246 = vld [vmem:[%s2 + $0x10] sm:$0xff]
    %v247 = vld [vmem:[%s2 + $0x18] sm:$0xff]
    %v248 = vld [vmem:[%s2 + $0x20] sm:$0xff]
    %v249 = vld [vmem:[%s2 + $0x28] sm:$0xff]
    %v250 = vld [vmem:[%s2 + $0x30] sm:$0xff]
    %v251 = vld [vmem:[%s2 + $0x38] sm:$0xff]
    %253 = vset.pattern.permute.xlu0 0
    %254 = vperm.xlu0 %253, %v244
    %v255 = vpop.permute.xlu0 %254
    %258 = vset.pattern.permute.xlu0 0
    %259 = vperm.xlu0 %258, %v245
    %v260 = vpop.permute.xlu0 %259
    %263 = vset.pattern.permute.xlu0 0
    %264 = vperm.xlu0 %263, %v246
    %v265 = vpop.permute.xlu0 %264
    %268 = vset.pattern.permute.xlu0 0
    %269 = vperm.xlu0 %268, %v247
    %v270 = vpop.permute.xlu0 %269
    %273 = vset.pattern.permute.xlu0 0
    %274 = vperm.xlu0 %273, %v248
    %v275 = vpop.permute.xlu0 %274
    %278 = vset.pattern.permute.xlu0 0
    %279 = vperm.xlu0 %278, %v249
    %v280 = vpop.permute.xlu0 %279
    %283 = vset.pattern.permute.xlu0 0
    %284 = vperm.xlu0 %283, %v250
    %v285 = vpop.permute.xlu0 %284
    %288 = vset.pattern.permute.xlu0 0
    %289 = vperm.xlu0 %288, %v251
    %v290 = vpop.permute.xlu0 %289
    %v292 = vadd.f32 %v236, %v255
    %v293 = vadd.f32 %v237, %v260
    %v294 = vadd.f32 %v238, %v265
    %v295 = vadd.f32 %v239, %v270
    %v296 = vadd.f32 %v240, %v275
    %v297 = vadd.f32 %v241, %v280
    %v298 = vadd.f32 %v242, %v285
    %v299 = vadd.f32 %v243, %v290
    %v300 = vmax.f32 %v292, 0.0
    %v301 = vmax.f32 %v293, 0.0
    %v302 = vmax.f32 %v294, 0.0
    %v303 = vmax.f32 %v295, 0.0
    %v304 = vmax.f32 %v296, 0.0
    %v305 = vmax.f32 %v297, 0.0
    %v306 = vmax.f32 %v298, 0.0
    %v307 = vmax.f32 %v299, 0.0
    %v308 = vld [vmem:[%s3] sm:$0xff]
    %v309 = vld [vmem:[%s3 + $0x8] sm:$0xff]
    %v310 = vld [vmem:[%s3 + $0x10] sm:$0xff]
    %v311 = vld [vmem:[%s3 + $0x18] sm:$0xff]
    %v312 = vld [vmem:[%s4] sm:$0xff]
    %v313 = vld [vmem:[%s4 + $0x8] sm:$0xff]
    %v314 = vld [vmem:[%s4 + $0x10] sm:$0xff]
    %v315 = vld [vmem:[%s4 + $0x18] sm:$0xff]
    %317 = vset.pattern.permute.xlu0 0
    %318 = vperm.xlu0 %317, %v312
    %v319 = vpop.permute.xlu0 %318
    %322 = vset.pattern.permute.xlu0 0
    %323 = vperm.xlu0 %322, %v313
    %v324 = vpop.permute.xlu0 %323
    %327 = vset.pattern.permute.xlu0 0
    %328 = vperm.xlu0 %327, %v314
    %v329 = vpop.permute.xlu0 %328
    %332 = vset.pattern.permute.xlu0 0
    %333 = vperm.xlu0 %332, %v315
    %v334 = vpop.permute.xlu0 %333
    %vm336 = vcmask 523264
    %v338 = vsel %vm336, %v308, 0
    %v341 = vsel %vm336, %v309, 0
    %v344 = vsel %vm336, %v310, 0
    %v347 = vsel %vm336, %v311, 0
    %349 = vmatprep.subr.mxu0 0.0
    %350 = vmatpush1.msra.mxu0 %v300
    %351 = vmatprep.subr.mxu0 0.0
    %352 = vmatpush1.msra.mxu0 %v301
    %353 = vmatprep.subr.mxu0 0.0
    %354 = vmatpush1.msra.mxu0 %v302
    %355 = vmatprep.subr.mxu0 0.0
    %356 = vmatpush1.msra.mxu0 %v303
    %357 = vmatprep.subr.mxu0 0.0
    %358 = vmatpush1.msra.mxu0 %v304
    %359 = vmatprep.subr.mxu0 0.0
    %360 = vmatpush1.msra.mxu0 %v305
    %361 = vmatprep.subr.mxu0 0.0
    %362 = vmatpush1.msra.mxu0 %v306
    %363 = vmatprep.subr.mxu0 0.0
    %364 = vmatpush1.msra.mxu0 %v307
    %365 = vmatprep.subr.mxu0 0.0
    %366 = vmatpush1.msra.mxu0 0.0
    %367 = vmatprep.subr.mxu0 0.0
    %368 = vmatpush1.msra.mxu0 0.0
    %369 = vmatprep.subr.mxu0 0.0
    %370 = vmatpush1.msra.mxu0 0.0
    %371 = vmatprep.subr.mxu0 0.0
    %372 = vmatpush1.msra.mxu0 0.0
    %373 = vmatprep.subr.mxu0 0.0
    %374 = vmatpush1.msra.mxu0 0.0
    %375 = vmatprep.subr.mxu0 0.0
    %376 = vmatpush1.msra.mxu0 0.0
    %377 = vmatprep.subr.mxu0 0.0
    %378 = vmatpush1.msra.mxu0 0.0
    %379 = vmatprep.subr.mxu0 0.0
    %380 = vmatpush1.msra.mxu0 0.0
    %381 = vmatprep.subr.mxu0 0.0
    %382 = vmatpush1.msra.mxu0 0.0
    %383 = vmatprep.subr.mxu0 0.0
    %384 = vmatpush1.msra.mxu0 0.0
    %385 = vmatprep.subr.mxu0 0.0
    %386 = vmatpush1.msra.mxu0 0.0
    %387 = vmatprep.subr.mxu0 0.0
    %388 = vmatpush1.msra.mxu0 0.0
    %389 = vmatprep.subr.mxu0 0.0
    %390 = vmatpush1.msra.mxu0 0.0
    %391 = vmatprep.subr.mxu0 0.0
    %392 = vmatpush1.msra.mxu0 0.0
    %393 = vmatprep.subr.mxu0 0.0
    %394 = vmatpush1.msra.mxu0 0.0
    %395 = vmatprep.subr.mxu0 0.0
    %396 = vmatpush1.msra.mxu0 0.0
    %397 = vmatprep.subr.mxu0 0.0
    %398 = vmatpush1.msra.mxu0 0.0
    %399 = vmatprep.subr.mxu0 0.0
    %400 = vmatpush1.msra.mxu0 0.0
    %401 = vmatprep.subr.mxu0 0.0
    %402 = vmatpush1.msra.mxu0 0.0
    %403 = vmatprep.subr.mxu0 0.0
    %404 = vmatpush1.msra.mxu0 0.0
    %405 = vmatprep.subr.mxu0 0.0
    %406 = vmatpush1.msra.mxu0 0.0
    %407 = vmatprep.subr.mxu0 0.0
    %408 = vmatpush1.msra.mxu0 0.0
    %409 = vmatprep.subr.mxu0 0.0
    %410 = vmatpush1.msra.mxu0 0.0
    %411 = vmatprep.subr.mxu0 0.0
    %412 = vmatpush1.msra.mxu0 0.0
    %413 = vmatprep.mubr.f32.mxu0 0.0
    %414 = vmatmul.mubr.f32.gmra.mrb[0].mxu0 %v338
    %v415 = vpop.f32.mrb[0].mxu0
    %v416 = vadd.f32 %v319, %v415
    %v417 = vpop.f32.mrb[0].mxu0
    %418 = vmatprep.mubr.f32.mxu0 0.0
    %419 = vmatmul.mubr.f32.gmra.mrb[0].mxu0 %v341
    %v420 = vpop.f32.mrb[0].mxu0
    %v421 = vadd.f32 %v324, %v420
    %v422 = vpop.f32.mrb[0].mxu0
    %423 = vmatprep.mubr.f32.mxu0 0.0
    %424 = vmatmul.mubr.f32.gmra.mrb[0].mxu0 %v344
    %v425 = vpop.f32.mrb[0].mxu0
    %v426 = vadd.f32 %v329, %v425
    %v427 = vpop.f32.mrb[0].mxu0
    %428 = vmatprep.mubr.f32.mxu0 0.0
    %429 = vmatmul.mubr.f32.gmra.mrb[0].mxu0 %v347
    %v430 = vpop.f32.mrb[0].mxu0
    %v431 = vadd.f32 %v334, %v430
    %v432 = vpop.f32.mrb[0].mxu0
    %433 = vdwg.mxu0
    %v434 = vmax.f32 %v416, 0.0
    %v435 = vmax.f32 %v421, 0.0
    %v436 = vmax.f32 %v426, 0.0
    %v437 = vmax.f32 %v431, 0.0
    %v438 = vld [vmem:[%s5] sm:$0x3]
    %v439 = vld [vmem:[%s6] sm:$0x3]
    %441 = vset.pattern.permute.xlu0 0
    %442 = vperm.xlu0 %441, %v439
    %v443 = vpop.permute.xlu0 %442
    %vm445 = vcmask 261120
    %v447 = vsel %vm445, %v438, 0
    %449 = vmatprep.subr.mxu0 0.0
    %450 = vmatpush1.msra.mxu0 %v434
    %451 = vmatprep.subr.mxu0 0.0
    %452 = vmatpush1.msra.mxu0 %v435
    %453 = vmatprep.subr.mxu0 0.0
    %454 = vmatpush1.msra.mxu0 %v436
    %455 = vmatprep.subr.mxu0 0.0
    %456 = vmatpush1.msra.mxu0 %v437
    %457 = vmatprep.subr.mxu0 0.0
    %458 = vmatpush1.msra.mxu0 0.0
    %459 = vmatprep.subr.mxu0 0.0
    %460 = vmatpush1.msra.mxu0 0.0
    %461 = vmatprep.subr.mxu0 0.0
    %462 = vmatpush1.msra.mxu0 0.0
    %463 = vmatprep.subr.mxu0 0.0
    %464 = vmatpush1.msra.mxu0 0.0
    %465 = vmatprep.subr.mxu0 0.0
    %466 = vmatpush1.msra.mxu0 0.0
    %467 = vmatprep.subr.mxu0 0.0
    %468 = vmatpush1.msra.mxu0 0.0
    %469 = vmatprep.subr.mxu0 0.0
    %470 = vmatpush1.msra.mxu0 0.0
    %471 = vmatprep.subr.mxu0 0.0
    %472 = vmatpush1.msra.mxu0 0.0
    %473 = vmatprep.subr.mxu0 0.0
    %474 = vmatpush1.msra.mxu0 0.0
    %475 = vmatprep.subr.mxu0 0.0
    %476 = vmatpush1.msra.mxu0 0.0
    %477 = vmatprep.subr.mxu0 0.0
    %478 = vmatpush1.msra.mxu0 0.0
    %479 = vmatprep.subr.mxu0 0.0
    %480 = vmatpush1.msra.mxu0 0.0
    %481 = vmatprep.subr.mxu0 0.0
    %482 = vmatpush1.msra.mxu0 0.0
    %483 = vmatprep.subr.mxu0 0.0
    %484 = vmatpush1.msra.mxu0 0.0
    %485 = vmatprep.subr.mxu0 0.0
    %486 = vmatpush1.msra.mxu0 0.0
    %487 = vmatprep.subr.mxu0 0.0
    %488 = vmatpush1.msra.mxu0 0.0
    %489 = vmatprep.subr.mxu0 0.0
    %490 = vmatpush1.msra.mxu0 0.0
    %491 = vmatprep.subr.mxu0 0.0
    %492 = vmatpush1.msra.mxu0 0.0
    %493 = vmatprep.subr.mxu0 0.0
    %494 = vmatpush1.msra.mxu0 0.0
    %495 = vmatprep.subr.mxu0 0.0
    %496 = vmatpush1.msra.mxu0 0.0
    %497 = vmatprep.subr.mxu0 0.0
    %498 = vmatpush1.msra.mxu0 0.0
    %499 = vmatprep.subr.mxu0 0.0
    %500 = vmatpush1.msra.mxu0 0.0
    %501 = vmatprep.subr.mxu0 0.0
    %502 = vmatpush1.msra.mxu0 0.0
    %503 = vmatprep.subr.mxu0 0.0
    %504 = vmatpush1.msra.mxu0 0.0
    %505 = vmatprep.subr.mxu0 0.0
    %506 = vmatpush1.msra.mxu0 0.0
    %507 = vmatprep.subr.mxu0 0.0
    %508 = vmatpush1.msra.mxu0 0.0
    %509 = vmatprep.subr.mxu0 0.0
    %510 = vmatpush1.msra.mxu0 0.0
    %511 = vmatprep.subr.mxu0 0.0
    %512 = vmatpush1.msra.mxu0 0.0
    %513 = vmatprep.mubr.f32.mxu0 0.0
    %514 = vmatmul.mubr.f32.gmra.mrb[0].mxu0 %v447
    %v515 = vpop.f32.mrb[0].mxu0
    %v516 = vadd.f32 %v443, %v515
    %v517 = vpop.f32.mrb[0].mxu0
    %518 = vdwg.mxu0
    %519 = vst [vmem:[#allocation2] sm:$0x3] %v516
    // Predicated region
    $region30: #{tpu_custom_call.1} parent=1 // pred_check
      _
    $region31: #{tpu_custom_call.1} parent=1 // pred_check_branch
      %521 = sbr.rel (0) target = $region33
    $region32: #{tpu_custom_call.1} parent=1 // pred_region
      %s523 = ssub.s32 32, 32
      %524 = vsyncadd [#allocation3], %s523
      %s526 = sshll.u32 [#allocation2], 4
      %s527 = int_to_ptr.vmem [resolvable:$true] %s526
      %529 = dma.vmem_to_hbm [thread:$0]  %s527, 32, %s7, [#allocation3]
    $region33: #{tpu_custom_call.1} parent=1 // pred_fallthru
      _
    // Predicated region
    $region34: #{tpu_custom_call.1} parent=1 // pred_check
      _
    $region35: #{tpu_custom_call.1} parent=1 // pred_check_branch
      %531 = sbr.rel (0) target = $region37
    $region36: #{tpu_custom_call.1} parent=1 // pred_region
      %532 = dma.done [#allocation3], 32
    $region37: #{tpu_custom_call.1} parent=1 // pred_fallthru
      _
    %533 = vsyncpa [#allocation3], 1

</llo_original>
